<compile_context>
chip_gen: v7x
topology: tpu7x:2x2x1
jax: 0.10.0
libtpu: 0.0.40
codegen_flags: <defaults>
</compile_context>

<pallas_src>
import math
import functools

import jax
import jax.numpy as jnp
from jax.experimental import pallas as pl
from jax.experimental.pallas import tpu as pltpu


# ----------------------------------------------------------------------------
# Kernel body
# ----------------------------------------------------------------------------
def _attn_step(q_ref, kv_ref, mask_ref, o_ref, m_sc, l_sc, acc_sc, *,
               inv_sqrt_e, compute_dtype):
    """One (batch-block, q-tile, kv-tile) flash-attention step.

    q_ref:    (Bt, tq, D)   VMEM, input dtype
    kv_ref:   (Bt, tk, D)   VMEM, input dtype (keys == values == inputs)
    mask_ref: (Bt, 1, tk)   VMEM f32 {0,1} mask, or None
    o_ref:    (Bt, tq, D)   VMEM output (written on last kv tile)
    m_sc, l_sc: (Bt, tq, 1) f32 running max / denominator
    acc_sc:   (Bt, tq, D)   f32 output accumulator
    """
    kv_idx = pl.program_id(2)

    @pl.when(kv_idx == 0)
    def _():
        m_sc[...] = jnp.full(m_sc.shape, -jnp.inf, dtype=jnp.float32)
        l_sc[...] = jnp.zeros(l_sc.shape, dtype=jnp.float32)
        acc_sc[...] = jnp.zeros(acc_sc.shape, dtype=jnp.float32)

    # Pre-scale queries once per step: Bt*tq*D multiplies instead of a
    # Bt*tq*tk multiply on the scores tile.
    q = (q_ref[...] * inv_sqrt_e).astype(compute_dtype)     # (Bt, tq, D)
    kv = kv_ref[...].astype(compute_dtype)                   # (Bt, tk, D)

    # scores[b, i, j] = <q_bi, k_bj>; f32 accumulation on the MXU.
    s = jnp.einsum("bqd,bkd->bqk", q, kv,
                   preferred_element_type=jnp.float32)        # (Bt, tq, tk)

    if mask_ref is not None:
        # Exact masked_fill semantics: fully-masked rows reproduce PyTorch's
        # uniform softmax weights.
        s = jnp.where(mask_ref[...] == 0, jnp.float32(-1e9), s)

    m_prev = m_sc[...]
    m_new = jnp.maximum(m_prev, jnp.max(s, axis=-1, keepdims=True))
    alpha = jnp.exp(m_prev - m_new)
    p = jnp.exp(s - m_new)
    l_sc[...] = alpha * l_sc[...] + jnp.sum(p, axis=-1, keepdims=True)
    acc_sc[...] = alpha * acc_sc[...] + jnp.einsum(
        "bqk,bkd->bqd", p.astype(compute_dtype), kv,
        preferred_element_type=jnp.float32)
    m_sc[...] = m_new

    @pl.when(kv_idx == pl.num_programs(2) - 1)
    def _():
        # Exact division (approx reciprocal broke the 1e-3 f32 tolerance).
        o_ref[...] = (acc_sc[...] / l_sc[...]).astype(o_ref.dtype)


def _attn_kernel_nomask(q_ref, kv_ref, o_ref, m_sc, l_sc, acc_sc, *,
                        inv_sqrt_e, compute_dtype):
    _attn_step(q_ref, kv_ref, None, o_ref, m_sc, l_sc, acc_sc,
               inv_sqrt_e=inv_sqrt_e, compute_dtype=compute_dtype)


def _attn_kernel_masked(q_ref, kv_ref, mask_ref, o_ref, m_sc, l_sc, acc_sc, *,
                        inv_sqrt_e, compute_dtype):
    _attn_step(q_ref, kv_ref, mask_ref, o_ref, m_sc, l_sc, acc_sc,
               inv_sqrt_e=inv_sqrt_e, compute_dtype=compute_dtype)


# ----------------------------------------------------------------------------
# Tile selection (VMEM-budgeted, largest-first)
# ----------------------------------------------------------------------------
_TILE_CANDIDATES = (2048, 1024, 512, 256, 128, 64, 32, 16, 8)
_VMEM_BUDGET = 24 * 1024 * 1024   # stays under v7x's 32 MiB scoped default
_VMEM_LIMIT = 32 * 1024 * 1024    # explicit scoped-VMEM limit (< physical on all gens)


def _vmem_estimate(bt, tq, tk, d, in_itemsize, masked):
    per_buf = bt * tq * d * in_itemsize          # q block
    per_buf += bt * tk * d * in_itemsize         # kv block
    per_buf += bt * tq * d * in_itemsize         # o block
    if masked:
        per_buf += bt * tk * 4
    total = 2 * per_buf                          # double-buffered pipeline
    total += bt * tq * d * 4                     # f32 accumulator scratch
    total += 2 * bt * tq * 4                     # running max / denom
    total += 3 * bt * tq * tk * 4                # f32 scores/probs temporaries
    return total


def _pick_kv_tile(seq):
    # kv tile must be a multiple of 128 (lane-dense mask block) or the full seq.
    for t in (512, 384, 256, 128):
        if seq % t == 0:
            return t
    return seq


def _select_tiles(batch, seq, d, in_itemsize, masked):
    """Returns (batch-fold Bt, q-tile tq, kv-tile tk)."""
    if seq <= 128:
        # Tiny sequences: fold batch items into one block so each grid step
        # does enough work to amortize the ~0.35 us per-step overhead.
        bt = 1
        for c in (16, 8, 4, 2):
            if batch % c == 0 and _vmem_estimate(
                    c, seq, seq, d, in_itemsize, masked) <= _VMEM_BUDGET:
                bt = c
                break
        return bt, seq, seq

    bt = 1
    tk = _pick_kv_tile(seq)
    tq = None
    for cand in _TILE_CANDIDATES:                # largest-first
        if seq % cand:
            continue
        if _vmem_estimate(bt, cand, tk, d, in_itemsize, masked) <= _VMEM_BUDGET:
            tq = cand
            break
    if tq is None:
        tq = 8 if seq % 8 == 0 else seq

    # Keep >= 2 blocks across the parallel grid axes so v7x's two TensorCores
    # both get work (no-op on single-TC v5e/v6e).
    while batch * (seq // tq) < 2 and tq >= 16 and seq % (tq // 2) == 0:
        tq //= 2
    return bt, tq, tk


# ----------------------------------------------------------------------------
# Module wrapper
# ----------------------------------------------------------------------------
class SelfAttentionPallas:
    """Pallas port of the PyTorch SelfAttention module (no learned params)."""

    def __init__(self, emb_dim, kqv_dim, num_heads=1, use_bf16_matmul=False):
        self.emb_dim = emb_dim
        self.kqv_dim = kqv_dim
        self.num_heads = num_heads      # unused in the reference forward pass
        # Opt-in precision/perf trade: feed the MXU bf16 operands (2-3x MXU
        # throughput on v5e/v6e/v7x) while keeping f32 accumulation.
        self.use_bf16_matmul = use_bf16_matmul

    def __call__(self, inputs, attention_mask=None):
        B, S, D = inputs.shape
        assert D == self.emb_dim
        inv_sqrt_e = 1.0 / math.sqrt(self.kqv_dim)
        masked = attention_mask is not None

        compute_dtype = inputs.dtype
        if self.use_bf16_matmul and inputs.dtype == jnp.float32:
            compute_dtype = jnp.bfloat16

        Bt, tq, tk = _select_tiles(B, S, D, inputs.dtype.itemsize, masked)
        grid = (B // Bt, S // tq, S // tk)

        # Last block dim is the full feature dim D (legal for any D): no
        # host-side pad to 128 / trailing slice, no DMA inflation.
        q_spec = pl.BlockSpec((Bt, tq, D), lambda b, qi, ki: (b, qi, 0))
        kv_spec = pl.BlockSpec((Bt, tk, D), lambda b, qi, ki: (b, ki, 0))
        o_spec = pl.BlockSpec((Bt, tq, D), lambda b, qi, ki: (b, qi, 0))
        scratch = [
            pltpu.VMEM((Bt, tq, 1), jnp.float32),   # running max
            pltpu.VMEM((Bt, tq, 1), jnp.float32),   # running denominator
            pltpu.VMEM((Bt, tq, D), jnp.float32),   # output accumulator
        ]
        cparams = pltpu.CompilerParams(
            dimension_semantics=("parallel", "parallel", "arbitrary"),
            vmem_limit_bytes=_VMEM_LIMIT)
        out_shape = jax.ShapeDtypeStruct((B, S, D), inputs.dtype)

        if not masked:
            kernel = functools.partial(_attn_kernel_nomask,
                                       inv_sqrt_e=inv_sqrt_e,
                                       compute_dtype=compute_dtype)
            return pl.pallas_call(
                kernel,
                out_shape=out_shape,
                grid_spec=pltpu.PrefetchScalarGridSpec(
                    num_scalar_prefetch=0,
                    grid=grid,
                    in_specs=[q_spec, kv_spec],
                    out_specs=o_spec,
                    scratch_shapes=scratch),
                compiler_params=cparams,
            )(inputs, inputs)

        # (B, S) -> (B, 1, S): the mask block (Bt, 1, tk) then has a size-1
        # sublane dim (== full dim) and a lane dim that is either a multiple
        # of 128 or the full sequence, satisfying the (8, 128) constraint.
        mask3 = attention_mask.reshape(B, 1, S).astype(jnp.float32)
        mask_spec = pl.BlockSpec((Bt, 1, tk), lambda b, qi, ki: (b, 0, ki))
        kernel = functools.partial(_attn_kernel_masked,
                                   inv_sqrt_e=inv_sqrt_e,
                                   compute_dtype=compute_dtype)
        return pl.pallas_call(
            kernel,
            out_shape=out_shape,
            grid_spec=pltpu.PrefetchScalarGridSpec(
                num_scalar_prefetch=0,
                grid=grid,
                in_specs=[q_spec, kv_spec, mask_spec],
                out_specs=o_spec,
                scratch_shapes=scratch),
            compiler_params=cparams,
        )(inputs, inputs, mask3)


# ----------------------------------------------------------------------------
# Reference + self-test
# ----------------------------------------------------------------------------
def _reference(inputs, kqv_dim, attention_mask=None):
    """Pure-JAX reference mirroring the PyTorch forward."""
    scores = jnp.matmul(inputs, jnp.swapaxes(inputs, -2, -1)) / math.sqrt(kqv_dim)
    if attention_mask is not None:
        scores = jnp.where(attention_mask[:, None, :] == 0, -1e9, scores)
    scores = jax.nn.softmax(scores, axis=-1)
    return jnp.matmul(scores, inputs)


if __name__ == "__main__":
    key = jax.random.PRNGKey(0)
    kx, km, kx2, km2 = jax.random.split(key, 4)

    # --- Small shape matching the module example: B=2, S=8, D=32 --------------
    B, S, D = 2, 8, 32
    kqv_dim = 32
    x = jax.random.normal(kx, (B, S, D), dtype=jnp.float32)
    mask = (jax.random.uniform(km, (B, S)) > 0.2).astype(jnp.float32)
    mask = mask.at[:, 0].set(1.0)   # keep at least one unmasked key per row

    attn = SelfAttentionPallas(emb_dim=D, kqv_dim=kqv_dim)

    out = jax.block_until_ready(attn(x))
    ref = _reference(x, kqv_dim)
    assert jnp.allclose(out, ref, atol=1e-3, rtol=1e-3), "no-mask mismatch (small)"

    out_m = jax.block_until_ready(attn(x, attention_mask=mask))
    ref_m = _reference(x, kqv_dim, attention_mask=mask)
    assert jnp.allclose(out_m, ref_m, atol=1e-3, rtol=1e-3), "masked mismatch (small)"

    # --- Larger shape to exercise the multi-kv-tile online-softmax path -------
    B2, S2, D2 = 2, 1024, 64
    x2 = jax.random.normal(kx2, (B2, S2, D2), dtype=jnp.float32)
    mask2 = (jax.random.uniform(km2, (B2, S2)) > 0.2).astype(jnp.float32)
    mask2 = mask2.at[:, 0].set(1.0)

    attn2 = SelfAttentionPallas(emb_dim=D2, kqv_dim=D2)

    out2 = jax.block_until_ready(attn2(x2))
    ref2 = _reference(x2, D2)
    assert jnp.allclose(out2, ref2, atol=2e-3, rtol=2e-3), "no-mask mismatch (tiled)"

    out2m = jax.block_until_ready(attn2(x2, attention_mask=mask2))
    ref2m = _reference(x2, D2, attention_mask=mask2)
    assert jnp.allclose(out2m, ref2m, atol=2e-3, rtol=2e-3), "masked mismatch (tiled)"

    print("KERNEL_OK")
</pallas_src>

<mosaic_0001>
module attributes {stable_mosaic.version = 11 : i64} {
  func.func @_attn_kernel_nomask(%arg0: i32, %arg1: i32, %arg2: i32, %arg3: memref<2x8x32xf32, #tpu.memory_space<vmem>>, %arg4: memref<2x8x32xf32, #tpu.memory_space<vmem>>, %arg5: memref<2x8x32xf32, #tpu.memory_space<vmem>>, %arg6: memref<2x8x1xf32, #tpu.memory_space<vmem>>, %arg7: memref<2x8x1xf32, #tpu.memory_space<vmem>>, %arg8: memref<2x8x32xf32, #tpu.memory_space<vmem>>) attributes {dimension_semantics = [#tpu.dimension_semantics<parallel>, #tpu.dimension_semantics<parallel>, #tpu.dimension_semantics<arbitrary>], iteration_bounds = array<i64: 1, 1, 1>, scalar_prefetch = 0 : i64, scratch_operands = 3 : i64, tpu.core_type = #tpu.core_type<tc>, window_params = [{transform_indices = @transform_0, window_bounds = array<i64: 2, 8, 32>}, {transform_indices = @transform_1, window_bounds = array<i64: 2, 8, 32>}, {transform_indices = @transform_2, window_bounds = array<i64: 2, 8, 32>}]} {
    %c0_i32 = arith.constant 0 : i32
    %0 = arith.cmpi eq, %arg2, %c0_i32 : i32
    %1 = arith.extui %0 : i1 to i32
    %c0_i32_0 = arith.constant 0 : i32
    %2 = arith.cmpi ne, %1, %c0_i32_0 : i32
    scf.if %2 {
      %cst_30 = arith.constant 0xFF800000 : f32
      %33 = vector.broadcast %cst_30 : f32 to vector<2x8x1xf32>
      %c0_31 = arith.constant 0 : index
      %c0_32 = arith.constant 0 : index
      %c0_33 = arith.constant 0 : index
      %34 = vector.load %arg6[%c0_31, %c0_32, %c0_33] : memref<2x8x1xf32, #tpu.memory_space<vmem>>, vector<2x8x1xf32>
      tpu.vector_store %arg6[%c0_31, %c0_32, %c0_33], %33 {strides = array<i32>} : memref<2x8x1xf32, #tpu.memory_space<vmem>>, vector<2x8x1xf32>,
      %cst_34 = arith.constant 0.000000e+00 : f32
      %35 = vector.broadcast %cst_34 : f32 to vector<2x8x1xf32>
      %c0_35 = arith.constant 0 : index
      %c0_36 = arith.constant 0 : index
      %c0_37 = arith.constant 0 : index
      %36 = vector.load %arg7[%c0_35, %c0_36, %c0_37] : memref<2x8x1xf32, #tpu.memory_space<vmem>>, vector<2x8x1xf32>
      tpu.vector_store %arg7[%c0_35, %c0_36, %c0_37], %35 {strides = array<i32>} : memref<2x8x1xf32, #tpu.memory_space<vmem>>, vector<2x8x1xf32>,
      %cst_38 = arith.constant 0.000000e+00 : f32
      %37 = vector.broadcast %cst_38 : f32 to vector<2x8x32xf32>
      %c0_39 = arith.constant 0 : index
      %c0_40 = arith.constant 0 : index
      %c0_41 = arith.constant 0 : index
      %38 = vector.load %arg8[%c0_39, %c0_40, %c0_41] : memref<2x8x32xf32, #tpu.memory_space<vmem>>, vector<2x8x32xf32>
      tpu.vector_store %arg8[%c0_39, %c0_40, %c0_41], %37 {strides = array<i32>} : memref<2x8x32xf32, #tpu.memory_space<vmem>>, vector<2x8x32xf32>,
    } else {
    }
    %c0 = arith.constant 0 : index
    %c0_1 = arith.constant 0 : index
    %c0_2 = arith.constant 0 : index
    %3 = vector.load %arg3[%c0, %c0_1, %c0_2] : memref<2x8x32xf32, #tpu.memory_space<vmem>>, vector<2x8x32xf32>
    %cst = arith.constant 0.176776692 : f32
    %4 = vector.broadcast %cst : f32 to vector<2x8x32xf32>
    %5 = arith.mulf %3, %4 : vector<2x8x32xf32>
    %c0_3 = arith.constant 0 : index
    %c0_4 = arith.constant 0 : index
    %c0_5 = arith.constant 0 : index
    %6 = vector.load %arg4[%c0_3, %c0_4, %c0_5] : memref<2x8x32xf32, #tpu.memory_space<vmem>>, vector<2x8x32xf32>
    "tpu.trace_start"() <{level = 10 : i32, message = "bqd,bkd->bqk"}> : () -> ()
    %cst_6 = arith.constant dense<0.000000e+00> : vector<2x8x8xf32>
    %7 = tpu.matmul %5, %6, %cst_6 {dimension_numbers = #tpu.dot_dimension_numbers<[2], [2], [1], [1], [0, 0, 0, 1, 1, 1], [0], [0]>} : vector<2x8x32xf32>, vector<2x8x32xf32>, vector<2x8x8xf32> -> vector<2x8x8xf32>
    "tpu.trace_stop"() : () -> ()
    %c0_7 = arith.constant 0 : index
    %c0_8 = arith.constant 0 : index
    %c0_9 = arith.constant 0 : index
    %8 = vector.load %arg6[%c0_7, %c0_8, %c0_9] : memref<2x8x1xf32, #tpu.memory_space<vmem>>, vector<2x8x1xf32>
    %cst_10 = arith.constant dense<0xFF800000> : vector<2x8xf32>
    %9 = vector.multi_reduction <maximumf>, %7, %cst_10 [2] : vector<2x8x8xf32> to vector<2x8xf32>
    %10 = vector.shape_cast %9 : vector<2x8xf32> to vector<2x8x1xf32>
    %11 = arith.maximumf %8, %10 : vector<2x8x1xf32>
    %12 = arith.subf %8, %11 : vector<2x8x1xf32>
    %13 = math.exp %12 : vector<2x8x1xf32>
    %14 = vector.broadcast %11 : vector<2x8x1xf32> to vector<2x8x8xf32>
    %15 = arith.subf %7, %14 : vector<2x8x8xf32>
    %16 = math.exp %15 : vector<2x8x8xf32>
    %c0_11 = arith.constant 0 : index
    %c0_12 = arith.constant 0 : index
    %c0_13 = arith.constant 0 : index
    %17 = vector.load %arg7[%c0_11, %c0_12, %c0_13] : memref<2x8x1xf32, #tpu.memory_space<vmem>>, vector<2x8x1xf32>
    %18 = arith.mulf %13, %17 : vector<2x8x1xf32>
    %cst_14 = arith.constant dense<0.000000e+00> : vector<2x8xf32>
    %19 = vector.multi_reduction <add>, %16, %cst_14 [2] : vector<2x8x8xf32> to vector<2x8xf32>
    %20 = vector.shape_cast %19 : vector<2x8xf32> to vector<2x8x1xf32>
    %21 = arith.addf %18, %20 : vector<2x8x1xf32>
    %c0_15 = arith.constant 0 : index
    %c0_16 = arith.constant 0 : index
    %c0_17 = arith.constant 0 : index
    %22 = vector.load %arg7[%c0_15, %c0_16, %c0_17] : memref<2x8x1xf32, #tpu.memory_space<vmem>>, vector<2x8x1xf32>
    tpu.vector_store %arg7[%c0_15, %c0_16, %c0_17], %21 {strides = array<i32>} : memref<2x8x1xf32, #tpu.memory_space<vmem>>, vector<2x8x1xf32>,
    %c0_18 = arith.constant 0 : index
    %c0_19 = arith.constant 0 : index
    %c0_20 = arith.constant 0 : index
    %23 = vector.load %arg8[%c0_18, %c0_19, %c0_20] : memref<2x8x32xf32, #tpu.memory_space<vmem>>, vector<2x8x32xf32>
    %24 = vector.broadcast %13 : vector<2x8x1xf32> to vector<2x8x32xf32>
    %25 = arith.mulf %24, %23 : vector<2x8x32xf32>
    "tpu.trace_start"() <{level = 10 : i32, message = "bqk,bkd->bqd"}> : () -> ()
    %cst_21 = arith.constant dense<0.000000e+00> : vector<2x8x32xf32>
    %26 = tpu.matmul %16, %6, %cst_21 {dimension_numbers = #tpu.dot_dimension_numbers<[2], [1], [1], [2], [0, 0, 0, 1, 1, 2], [0], [0]>} : vector<2x8x8xf32>, vector<2x8x32xf32>, vector<2x8x32xf32> -> vector<2x8x32xf32>
    "tpu.trace_stop"() : () -> ()
    %27 = arith.addf %25, %26 : vector<2x8x32xf32>
    %c0_22 = arith.constant 0 : index
    %c0_23 = arith.constant 0 : index
    %c0_24 = arith.constant 0 : index
    %28 = vector.load %arg8[%c0_22, %c0_23, %c0_24] : memref<2x8x32xf32, #tpu.memory_space<vmem>>, vector<2x8x32xf32>
    tpu.vector_store %arg8[%c0_22, %c0_23, %c0_24], %27 {strides = array<i32>} : memref<2x8x32xf32, #tpu.memory_space<vmem>>, vector<2x8x32xf32>,
    %c0_25 = arith.constant 0 : index
    %c0_26 = arith.constant 0 : index
    %c0_27 = arith.constant 0 : index
    %29 = vector.load %arg6[%c0_25, %c0_26, %c0_27] : memref<2x8x1xf32, #tpu.memory_space<vmem>>, vector<2x8x1xf32>
    tpu.vector_store %arg6[%c0_25, %c0_26, %c0_27], %11 {strides = array<i32>} : memref<2x8x1xf32, #tpu.memory_space<vmem>>, vector<2x8x1xf32>,
    %c0_i32_28 = arith.constant 0 : i32
    %30 = arith.cmpi eq, %arg2, %c0_i32_28 : i32
    %31 = arith.extui %30 : i1 to i32
    %c0_i32_29 = arith.constant 0 : i32
    %32 = arith.cmpi ne, %31, %c0_i32_29 : i32
    scf.if %32 {
      %c0_30 = arith.constant 0 : index
      %c0_31 = arith.constant 0 : index
      %c0_32 = arith.constant 0 : index
      %33 = vector.load %arg8[%c0_30, %c0_31, %c0_32] : memref<2x8x32xf32, #tpu.memory_space<vmem>>, vector<2x8x32xf32>
      %c0_33 = arith.constant 0 : index
      %c0_34 = arith.constant 0 : index
      %c0_35 = arith.constant 0 : index
      %34 = vector.load %arg7[%c0_33, %c0_34, %c0_35] : memref<2x8x1xf32, #tpu.memory_space<vmem>>, vector<2x8x1xf32>
      %35 = vector.broadcast %34 : vector<2x8x1xf32> to vector<2x8x32xf32>
      %36 = arith.divf %33, %35 : vector<2x8x32xf32>
      %c0_36 = arith.constant 0 : index
      %c0_37 = arith.constant 0 : index
      %c0_38 = arith.constant 0 : index
      %37 = vector.load %arg5[%c0_36, %c0_37, %c0_38] : memref<2x8x32xf32, #tpu.memory_space<vmem>>, vector<2x8x32xf32>
      tpu.vector_store %arg5[%c0_36, %c0_37, %c0_38], %36 {strides = array<i32>} : memref<2x8x32xf32, #tpu.memory_space<vmem>>, vector<2x8x32xf32>,
    } else {
    }
    return
  }
  func.func @transform_0(%arg0: i32, %arg1: i32, %arg2: i32) -> (i32, i32, i32) {
    %c0_i32 = arith.constant 0 : i32
    %c0_i32_0 = arith.constant 0 : i32
    return %arg0, %arg1, %c0_i32 : i32, i32, i32
  }
  func.func @transform_1(%arg0: i32, %arg1: i32, %arg2: i32) -> (i32, i32, i32) {
    %c0_i32 = arith.constant 0 : i32
    %c0_i32_0 = arith.constant 0 : i32
    return %arg0, %arg2, %c0_i32 : i32, i32, i32
  }
  func.func @transform_2(%arg0: i32, %arg1: i32, %arg2: i32) -> (i32, i32, i32) {
    %c0_i32 = arith.constant 0 : i32
    %c0_i32_0 = arith.constant 0 : i32
    return %arg0, %arg1, %c0_i32 : i32, i32, i32
  }
}

</mosaic_0001>

<llo_original>
// kernel: tpu_custom_call.1
$region0: #{tpu_custom_call.1}
  #allocation0 [shape = 'u32[]', space=smem, size = 0x4, offset = 0x4, fixed_abs, tag = 'smem constant byte address 0x4 - core index']
  #allocation1 [shape = 'u32[144,128]{1,0:T(1,128)}', space=vmem, size = 0x12000, scoped, tag = 'internal scratch']
  #allocation2 [shape = 'f32[2,8,1]{2,1,0:T(8,128)}', space=vmem, size = 0x2000, scoped, tag = 'scratch operand']
  #allocation3 [shape = 'f32[2,8,1]{2,1,0:T(8,128)}', space=vmem, size = 0x2000, scoped, tag = 'scratch operand']
  #allocation4 [shape = 'f32[2,8,32]{2,1,0:T(8,128)}', space=vmem, size = 0x2000, scoped, tag = 'scratch operand']
  %s0 = inlined_call_operand.hbm [shape: f32[2,8,32], index: 0, kind: input, shape index: {}]
  %s1 = inlined_call_operand.hbm [shape: f32[2,8,32], index: 1, kind: input, shape index: {}]
  %s2 = inlined_call_operand.hbm [shape: f32[2,8,32], index: 2, kind: output, shape index: {}]
  %s3 = sld [smem:[#allocation0]]
  $region34: #{tpu_custom_call.1} parent=0
    _
  %s5 = ssub.s32 1, %s3
  %s6 = scalar_select 0, %s5, %s3
  $region1: #{tpu_custom_call.1} parent=0
    #allocation5 [shape = 'u8[8192]{0}', space=vmem, size = 0x2000, scoped, tag = 'input window, operand 0, single buffered']
    #allocation6 [shape = 's32[1]{0}', space=sflag, size = 0x4, scoped, tag = 'scoped memory for tpu_custom_call.1']
    #allocation7 [shape = 's32[1]{0}', space=sflag, size = 0x4, scoped, tag = 'scoped memory for tpu_custom_call.1']
    #allocation8 [shape = 'u8[8192]{0}', space=vmem, size = 0x2000, scoped, tag = 'input window, operand 1, single buffered']
    #allocation9 [shape = 's32[1]{0}', space=sflag, size = 0x4, scoped, tag = 'scoped memory for tpu_custom_call.1']
    #allocation10 [shape = 'u8[8192]{0}', space=vmem, size = 0x2000, scoped, tag = 'output window, operand 0, single buffered']
    %7 = vsyncpa [#allocation6], 0
    %8 = vsyncpa [#allocation9], 0
    %9 = vsyncpa [#allocation7], 0
    // Predicated region
    $region2: #{tpu_custom_call.1} parent=1 // pred_check
      _
    $region3: #{tpu_custom_call.1} parent=1 // pred_check_branch
      %11 = sbr.rel (0) target = $region5
    $region4: #{tpu_custom_call.1} parent=1 // pred_region
      %s13 = ssub.s32 256, 256
      %14 = vsyncadd [#allocation6], %s13
      %s15 = sshll.u32 [#allocation5], 4
      %s16 = int_to_ptr.vmem [resolvable:$true] %s15
      %21 = dma.hbm_to_vmem [thread:$0]  %s0, 256, %s16, [#allocation6], 128, 128, 8
    $region5: #{tpu_custom_call.1} parent=1 // pred_fallthru
      _
    // Predicated region
    $region6: #{tpu_custom_call.1} parent=1 // pred_check
      _
    $region7: #{tpu_custom_call.1} parent=1 // pred_check_branch
      %23 = sbr.rel (0) target = $region9
    $region8: #{tpu_custom_call.1} parent=1 // pred_region
      %s25 = ssub.s32 256, 256
      %26 = vsyncadd [#allocation9], %s25
      %s27 = sshll.u32 [#allocation8], 4
      %s28 = int_to_ptr.vmem [resolvable:$true] %s27
      %33 = dma.hbm_to_vmem [thread:$0]  %s1, 256, %s28, [#allocation9], 128, 128, 8
    $region9: #{tpu_custom_call.1} parent=1 // pred_fallthru
      _
    // Predicated region
    $region10: #{tpu_custom_call.1} parent=1 // pred_check
      _
    $region11: #{tpu_custom_call.1} parent=1 // pred_check_branch
      %35 = sbr.rel (0) target = $region13
    $region12: #{tpu_custom_call.1} parent=1 // pred_region
      %36 = dma.done [#allocation6], 256
    $region13: #{tpu_custom_call.1} parent=1 // pred_fallthru
      _
    // Predicated region
    $region14: #{tpu_custom_call.1} parent=1 // pred_check
      _
    $region15: #{tpu_custom_call.1} parent=1 // pred_check_branch
      %38 = sbr.rel (0) target = $region17
    $region16: #{tpu_custom_call.1} parent=1 // pred_region
      %39 = dma.done [#allocation9], 256
    $region17: #{tpu_custom_call.1} parent=1 // pred_fallthru
      _
    %p40 = scmp.eq.s32.totalorder 0, 0
    // Predicated region
    $region18: #{tpu_custom_call.1} parent=1 // pred_check
      %p41 = pneg %p40
    $region19: #{tpu_custom_call.1} parent=1 // pred_check_branch
      %43 = sbr.rel (%p41) target = $region21
    $region20: #{tpu_custom_call.1} parent=1 // pred_region
      %vm44 = vcmask 7168
      %45 = vst.msk [vmem:[#allocation2] sm:$0xff] %vm44, -inf
      %46 = vst.msk [vmem:[#allocation2 + $0x8] sm:$0xff] %vm44, -inf
      %47 = vst.msk [vmem:[#allocation3] sm:$0xff] %vm44, 0.0
      %48 = vst.msk [vmem:[#allocation3 + $0x8] sm:$0xff] %vm44, 0.0
      %vm49 = vcmask 261120
      %50 = vst.msk [vmem:[#allocation4] sm:$0xff] %vm49, 0.0
      %51 = vst.msk [vmem:[#allocation4 + $0x8] sm:$0xff] %vm49, 0.0
    $region21: #{tpu_custom_call.1} parent=1 // pred_fallthru
      _
    %v52 = vld [vmem:[#allocation5] sm:$0xff]
    %v53 = vld [vmem:[#allocation5 + $0x8] sm:$0xff]
    %v54 = vmul.f32 %v52, 0.17677669
    %v55 = vmul.f32 %v53, 0.17677669
    %v56 = vld [vmem:[#allocation8] sm:$0xff]
    %v57 = vld [vmem:[#allocation8 + $0x8] sm:$0xff]
    %vm58 = vcmask 261120
    %v60 = vsel %vm58, %v54, 0
    %v63 = vsel %vm58, %v56, 0
    %65 = vmatprep.subr.mxu0 0.0
    %66 = vmatpush1.xpose.msra.mxu0 %v63
    %67 = vmatprep.subr.mxu0 0.0
    %68 = vmatpush1.xpose.msra.mxu0 0.0
    %69 = vmatprep.subr.mxu0 0.0
    %70 = vmatpush1.xpose.msra.mxu0 0.0
    %71 = vmatprep.subr.mxu0 0.0
    %72 = vmatpush1.xpose.msra.mxu0 0.0
    %73 = vmatprep.subr.mxu0 0.0
    %74 = vmatpush1.xpose.msra.mxu0 0.0
    %75 = vmatprep.subr.mxu0 0.0
    %76 = vmatpush1.xpose.msra.mxu0 0.0
    %77 = vmatprep.subr.mxu0 0.0
    %78 = vmatpush1.xpose.msra.mxu0 0.0
    %79 = vmatprep.subr.mxu0 0.0
    %80 = vmatpush1.xpose.msra.mxu0 0.0
    %81 = vmatprep.subr.mxu0 0.0
    %82 = vmatpush1.xpose.msra.mxu0 0.0
    %83 = vmatprep.subr.mxu0 0.0
    %84 = vmatpush1.xpose.msra.mxu0 0.0
    %85 = vmatprep.subr.mxu0 0.0
    %86 = vmatpush1.xpose.msra.mxu0 0.0
    %87 = vmatprep.subr.mxu0 0.0
    %88 = vmatpush1.xpose.msra.mxu0 0.0
    %89 = vmatprep.subr.mxu0 0.0
    %90 = vmatpush1.xpose.msra.mxu0 0.0
    %91 = vmatprep.subr.mxu0 0.0
    %92 = vmatpush1.xpose.msra.mxu0 0.0
    %93 = vmatprep.subr.mxu0 0.0
    %94 = vmatpush1.xpose.msra.mxu0 0.0
    %95 = vmatprep.subr.mxu0 0.0
    %96 = vmatpush1.xpose.msra.mxu0 0.0
    %97 = vmatprep.subr.mxu0 0.0
    %98 = vmatpush1.xpose.msra.mxu0 0.0
    %99 = vmatprep.subr.mxu0 0.0
    %100 = vmatpush1.xpose.msra.mxu0 0.0
    %101 = vmatprep.subr.mxu0 0.0
    %102 = vmatpush1.xpose.msra.mxu0 0.0
    %103 = vmatprep.subr.mxu0 0.0
    %104 = vmatpush1.xpose.msra.mxu0 0.0
    %105 = vmatprep.subr.mxu0 0.0
    %106 = vmatpush1.xpose.msra.mxu0 0.0
    %107 = vmatprep.subr.mxu0 0.0
    %108 = vmatpush1.xpose.msra.mxu0 0.0
    %109 = vmatprep.subr.mxu0 0.0
    %110 = vmatpush1.xpose.msra.mxu0 0.0
    %111 = vmatprep.subr.mxu0 0.0
    %112 = vmatpush1.xpose.msra.mxu0 0.0
    %113 = vmatprep.subr.mxu0 0.0
    %114 = vmatpush1.xpose.msra.mxu0 0.0
    %115 = vmatprep.subr.mxu0 0.0
    %116 = vmatpush1.xpose.msra.mxu0 0.0
    %117 = vmatprep.subr.mxu0 0.0
    %118 = vmatpush1.xpose.msra.mxu0 0.0
    %119 = vmatprep.subr.mxu0 0.0
    %120 = vmatpush1.xpose.msra.mxu0 0.0
    %121 = vmatprep.subr.mxu0 0.0
    %122 = vmatpush1.xpose.msra.mxu0 0.0
    %123 = vmatprep.subr.mxu0 0.0
    %124 = vmatpush1.xpose.msra.mxu0 0.0
    %125 = vmatprep.subr.mxu0 0.0
    %126 = vmatpush1.xpose.msra.mxu0 0.0
    %127 = vmatprep.subr.mxu0 0.0
    %128 = vmatpush1.xpose.msra.mxu0 0.0
    %129 = vmatprep.mubr.f32.mxu0 0.0
    %130 = vmatmul.mubr.f32.gmra.mrb[0].mxu0 %v60
    %v131 = vpop.f32.mrb[0].mxu0
    %v132 = vadd.f32 0.0, %v131
    %v133 = vpop.f32.mrb[0].mxu0
    %134 = vdwg.mxu0
    %v136 = vsel %vm58, %v55, 0
    %v139 = vsel %vm58, %v57, 0
    %141 = vmatprep.subr.mxu0 0.0
    %142 = vmatpush1.xpose.msra.mxu0 %v139
    %143 = vmatprep.subr.mxu0 0.0
    %144 = vmatpush1.xpose.msra.mxu0 0.0
    %145 = vmatprep.subr.mxu0 0.0
    %146 = vmatpush1.xpose.msra.mxu0 0.0
    %147 = vmatprep.subr.mxu0 0.0
    %148 = vmatpush1.xpose.msra.mxu0 0.0
    %149 = vmatprep.subr.mxu0 0.0
    %150 = vmatpush1.xpose.msra.mxu0 0.0
    %151 = vmatprep.subr.mxu0 0.0
    %152 = vmatpush1.xpose.msra.mxu0 0.0
    %153 = vmatprep.subr.mxu0 0.0
    %154 = vmatpush1.xpose.msra.mxu0 0.0
    %155 = vmatprep.subr.mxu0 0.0
    %156 = vmatpush1.xpose.msra.mxu0 0.0
    %157 = vmatprep.subr.mxu0 0.0
    %158 = vmatpush1.xpose.msra.mxu0 0.0
    %159 = vmatprep.subr.mxu0 0.0
    %160 = vmatpush1.xpose.msra.mxu0 0.0
    %161 = vmatprep.subr.mxu0 0.0
    %162 = vmatpush1.xpose.msra.mxu0 0.0
    %163 = vmatprep.subr.mxu0 0.0
    %164 = vmatpush1.xpose.msra.mxu0 0.0
    %165 = vmatprep.subr.mxu0 0.0
    %166 = vmatpush1.xpose.msra.mxu0 0.0
    %167 = vmatprep.subr.mxu0 0.0
    %168 = vmatpush1.xpose.msra.mxu0 0.0
    %169 = vmatprep.subr.mxu0 0.0
    %170 = vmatpush1.xpose.msra.mxu0 0.0
    %171 = vmatprep.subr.mxu0 0.0
    %172 = vmatpush1.xpose.msra.mxu0 0.0
    %173 = vmatprep.subr.mxu0 0.0
    %174 = vmatpush1.xpose.msra.mxu0 0.0
    %175 = vmatprep.subr.mxu0 0.0
    %176 = vmatpush1.xpose.msra.mxu0 0.0
    %177 = vmatprep.subr.mxu0 0.0
    %178 = vmatpush1.xpose.msra.mxu0 0.0
    %179 = vmatprep.subr.mxu0 0.0
    %180 = vmatpush1.xpose.msra.mxu0 0.0
    %181 = vmatprep.subr.mxu0 0.0
    %182 = vmatpush1.xpose.msra.mxu0 0.0
    %183 = vmatprep.subr.mxu0 0.0
    %184 = vmatpush1.xpose.msra.mxu0 0.0
    %185 = vmatprep.subr.mxu0 0.0
    %186 = vmatpush1.xpose.msra.mxu0 0.0
    %187 = vmatprep.subr.mxu0 0.0
    %188 = vmatpush1.xpose.msra.mxu0 0.0
    %189 = vmatprep.subr.mxu0 0.0
    %190 = vmatpush1.xpose.msra.mxu0 0.0
    %191 = vmatprep.subr.mxu0 0.0
    %192 = vmatpush1.xpose.msra.mxu0 0.0
    %193 = vmatprep.subr.mxu0 0.0
    %194 = vmatpush1.xpose.msra.mxu0 0.0
    %195 = vmatprep.subr.mxu0 0.0
    %196 = vmatpush1.xpose.msra.mxu0 0.0
    %197 = vmatprep.subr.mxu0 0.0
    %198 = vmatpush1.xpose.msra.mxu0 0.0
    %199 = vmatprep.subr.mxu0 0.0
    %200 = vmatpush1.xpose.msra.mxu0 0.0
    %201 = vmatprep.subr.mxu0 0.0
    %202 = vmatpush1.xpose.msra.mxu0 0.0
    %203 = vmatprep.subr.mxu0 0.0
    %204 = vmatpush1.xpose.msra.mxu0 0.0
    %205 = vmatprep.mubr.f32.mxu0 0.0
    %206 = vmatmul.mubr.f32.gmra.mrb[0].mxu0 %v136
    %v207 = vpop.f32.mrb[0].mxu0
    %v208 = vadd.f32 0.0, %v207
    %v209 = vpop.f32.mrb[0].mxu0
    %210 = vdwg.mxu0
    %v211 = vld [vmem:[#allocation2] sm:$0xff]
    %v212 = vld [vmem:[#allocation2 + $0x8] sm:$0xff]
    %vm213 = vcmask 64512
    %v214 = vsel %vm213, %v132, -inf
    %215 = vmax.xlane.f32.xlu0 %v214
    %v216 = vpop.xlane.xlu0 %215
    %v217 = vsel %vm213, %v208, -inf
    %218 = vmax.xlane.f32.xlu0 %v217
    %v219 = vpop.xlane.xlu0 %218
    %v220 = vmax.f32 %v211, %v216
    %v221 = vmax.f32 %v212, %v219
    %v222 = vsub.f32 %v211, %v220
    %v223 = vsub.f32 %v212, %v221
    %v224 = vmul.f32 %v222, 1.442695
    %v225 = vpow.pop %v224
    %v226 = vmul.f32 %v223, 1.442695
    %v227 = vpow.pop %v226
    %229 = vset.pattern.permute.xlu0 0
    %230 = vperm.xlu0 %229, %v220
    %v231 = vpop.permute.xlu0 %230
    %234 = vset.pattern.permute.xlu0 0
    %235 = vperm.xlu0 %234, %v221
    %v236 = vpop.permute.xlu0 %235
    %v238 = vsub.f32 %v132, %v231
    %v239 = vsub.f32 %v208, %v236
    %v240 = vmul.f32 %v238, 1.442695
    %v241 = vpow.pop %v240
    %v242 = vmul.f32 %v239, 1.442695
    %v243 = vpow.pop %v242
    %v244 = vld [vmem:[#allocation3] sm:$0xff]
    %v245 = vld [vmem:[#allocation3 + $0x8] sm:$0xff]
    %v246 = vmul.f32 %v225, %v244
    %v247 = vmul.f32 %v227, %v245
    %v248 = vsel %vm213, %v241, 0.0
    %249 = vadd.xlane.f32.xlu0 %v248
    %v250 = vpop.xlane.xlu0 %249
    %v251 = vsel %vm213, %v243, 0.0
    %252 = vadd.xlane.f32.xlu0 %v251
    %v253 = vpop.xlane.xlu0 %252
    %v254 = vadd.f32 %v246, %v250
    %v255 = vadd.f32 %v247, %v253
    %vm256 = vcmask 7168
    %257 = vst.msk [vmem:[#allocation3] sm:$0xff] %vm256, %v254
    %258 = vst.msk [vmem:[#allocation3 + $0x8] sm:$0xff] %vm256, %v255
    %v259 = vld [vmem:[#allocation4] sm:$0xff]
    %v260 = vld [vmem:[#allocation4 + $0x8] sm:$0xff]
    %262 = vset.pattern.permute.xlu0 0
    %263 = vperm.xlu0 %262, %v225
    %v264 = vpop.permute.xlu0 %263
    %267 = vset.pattern.permute.xlu0 0
    %268 = vperm.xlu0 %267, %v227
    %v269 = vpop.permute.xlu0 %268
    %v271 = vmul.f32 %v264, %v259
    %v272 = vmul.f32 %v269, %v260
    %v274 = vsel %vm213, %v241, 0
    %276 = vmatprep.subr.mxu0 0.0
    %277 = vmatpush1.msra.mxu0 %v56
    %278 = vmatprep.subr.mxu0 0.0
    %279 = vmatpush1.msra.mxu0 0.0
    %280 = vmatprep.subr.mxu0 0.0
    %281 = vmatpush1.msra.mxu0 0.0
    %282 = vmatprep.subr.mxu0 0.0
    %283 = vmatpush1.msra.mxu0 0.0
    %284 = vmatprep.subr.mxu0 0.0
    %285 = vmatpush1.msra.mxu0 0.0
    %286 = vmatprep.subr.mxu0 0.0
    %287 = vmatpush1.msra.mxu0 0.0
    %288 = vmatprep.subr.mxu0 0.0
    %289 = vmatpush1.msra.mxu0 0.0
    %290 = vmatprep.subr.mxu0 0.0
    %291 = vmatpush1.msra.mxu0 0.0
    %292 = vmatprep.subr.mxu0 0.0
    %293 = vmatpush1.msra.mxu0 0.0
    %294 = vmatprep.subr.mxu0 0.0
    %295 = vmatpush1.msra.mxu0 0.0
    %296 = vmatprep.subr.mxu0 0.0
    %297 = vmatpush1.msra.mxu0 0.0
    %298 = vmatprep.subr.mxu0 0.0
    %299 = vmatpush1.msra.mxu0 0.0
    %300 = vmatprep.subr.mxu0 0.0
    %301 = vmatpush1.msra.mxu0 0.0
    %302 = vmatprep.subr.mxu0 0.0
    %303 = vmatpush1.msra.mxu0 0.0
    %304 = vmatprep.subr.mxu0 0.0
    %305 = vmatpush1.msra.mxu0 0.0
    %306 = vmatprep.subr.mxu0 0.0
    %307 = vmatpush1.msra.mxu0 0.0
    %308 = vmatprep.subr.mxu0 0.0
    %309 = vmatpush1.msra.mxu0 0.0
    %310 = vmatprep.subr.mxu0 0.0
    %311 = vmatpush1.msra.mxu0 0.0
    %312 = vmatprep.subr.mxu0 0.0
    %313 = vmatpush1.msra.mxu0 0.0
    %314 = vmatprep.subr.mxu0 0.0
    %315 = vmatpush1.msra.mxu0 0.0
    %316 = vmatprep.subr.mxu0 0.0
    %317 = vmatpush1.msra.mxu0 0.0
    %318 = vmatprep.subr.mxu0 0.0
    %319 = vmatpush1.msra.mxu0 0.0
    %320 = vmatprep.subr.mxu0 0.0
    %321 = vmatpush1.msra.mxu0 0.0
    %322 = vmatprep.subr.mxu0 0.0
    %323 = vmatpush1.msra.mxu0 0.0
    %324 = vmatprep.subr.mxu0 0.0
    %325 = vmatpush1.msra.mxu0 0.0
    %326 = vmatprep.subr.mxu0 0.0
    %327 = vmatpush1.msra.mxu0 0.0
    %328 = vmatprep.subr.mxu0 0.0
    %329 = vmatpush1.msra.mxu0 0.0
    %330 = vmatprep.subr.mxu0 0.0
    %331 = vmatpush1.msra.mxu0 0.0
    %332 = vmatprep.subr.mxu0 0.0
    %333 = vmatpush1.msra.mxu0 0.0
    %334 = vmatprep.subr.mxu0 0.0
    %335 = vmatpush1.msra.mxu0 0.0
    %336 = vmatprep.subr.mxu0 0.0
    %337 = vmatpush1.msra.mxu0 0.0
    %338 = vmatprep.subr.mxu0 0.0
    %339 = vmatpush1.msra.mxu0 0.0
    %340 = vmatprep.mubr.f32.mxu0 0.0
    %341 = vmatmul.mubr.f32.gmra.mrb[0].mxu0 %v274
    %v342 = vpop.f32.mrb[0].mxu0
    %v343 = vadd.f32 0.0, %v342
    %v344 = vpop.f32.mrb[0].mxu0
    %345 = vdwg.mxu0
    %v347 = vsel %vm213, %v243, 0
    %349 = vmatprep.subr.mxu0 0.0
    %350 = vmatpush1.msra.mxu0 %v57
    %351 = vmatprep.subr.mxu0 0.0
    %352 = vmatpush1.msra.mxu0 0.0
    %353 = vmatprep.subr.mxu0 0.0
    %354 = vmatpush1.msra.mxu0 0.0
    %355 = vmatprep.subr.mxu0 0.0
    %356 = vmatpush1.msra.mxu0 0.0
    %357 = vmatprep.subr.mxu0 0.0
    %358 = vmatpush1.msra.mxu0 0.0
    %359 = vmatprep.subr.mxu0 0.0
    %360 = vmatpush1.msra.mxu0 0.0
    %361 = vmatprep.subr.mxu0 0.0
    %362 = vmatpush1.msra.mxu0 0.0
    %363 = vmatprep.subr.mxu0 0.0
    %364 = vmatpush1.msra.mxu0 0.0
    %365 = vmatprep.subr.mxu0 0.0
    %366 = vmatpush1.msra.mxu0 0.0
    %367 = vmatprep.subr.mxu0 0.0
    %368 = vmatpush1.msra.mxu0 0.0
    %369 = vmatprep.subr.mxu0 0.0
    %370 = vmatpush1.msra.mxu0 0.0
    %371 = vmatprep.subr.mxu0 0.0
    %372 = vmatpush1.msra.mxu0 0.0
    %373 = vmatprep.subr.mxu0 0.0
    %374 = vmatpush1.msra.mxu0 0.0
    %375 = vmatprep.subr.mxu0 0.0
    %376 = vmatpush1.msra.mxu0 0.0
    %377 = vmatprep.subr.mxu0 0.0
    %378 = vmatpush1.msra.mxu0 0.0
    %379 = vmatprep.subr.mxu0 0.0
    %380 = vmatpush1.msra.mxu0 0.0
    %381 = vmatprep.subr.mxu0 0.0
    %382 = vmatpush1.msra.mxu0 0.0
    %383 = vmatprep.subr.mxu0 0.0
    %384 = vmatpush1.msra.mxu0 0.0
    %385 = vmatprep.subr.mxu0 0.0
    %386 = vmatpush1.msra.mxu0 0.0
    %387 = vmatprep.subr.mxu0 0.0
    %388 = vmatpush1.msra.mxu0 0.0
    %389 = vmatprep.subr.mxu0 0.0
    %390 = vmatpush1.msra.mxu0 0.0
    %391 = vmatprep.subr.mxu0 0.0
    %392 = vmatpush1.msra.mxu0 0.0
    %393 = vmatprep.subr.mxu0 0.0
    %394 = vmatpush1.msra.mxu0 0.0
    %395 = vmatprep.subr.mxu0 0.0
    %396 = vmatpush1.msra.mxu0 0.0
    %397 = vmatprep.subr.mxu0 0.0
    %398 = vmatpush1.msra.mxu0 0.0
    %399 = vmatprep.subr.mxu0 0.0
    %400 = vmatpush1.msra.mxu0 0.0
    %401 = vmatprep.subr.mxu0 0.0
    %402 = vmatpush1.msra.mxu0 0.0
    %403 = vmatprep.subr.mxu0 0.0
    %404 = vmatpush1.msra.mxu0 0.0
    %405 = vmatprep.subr.mxu0 0.0
    %406 = vmatpush1.msra.mxu0 0.0
    %407 = vmatprep.subr.mxu0 0.0
    %408 = vmatpush1.msra.mxu0 0.0
    %409 = vmatprep.subr.mxu0 0.0
    %410 = vmatpush1.msra.mxu0 0.0
    %411 = vmatprep.subr.mxu0 0.0
    %412 = vmatpush1.msra.mxu0 0.0
    %413 = vmatprep.mubr.f32.mxu0 0.0
    %414 = vmatmul.mubr.f32.gmra.mrb[0].mxu0 %v347
    %v415 = vpop.f32.mrb[0].mxu0
    %v416 = vadd.f32 0.0, %v415
    %v417 = vpop.f32.mrb[0].mxu0
    %418 = vdwg.mxu0
    %v419 = vadd.f32 %v271, %v343
    %v420 = vadd.f32 %v272, %v416
    %421 = vst.msk [vmem:[#allocation4] sm:$0xff] %vm58, %v419
    %422 = vst.msk [vmem:[#allocation4 + $0x8] sm:$0xff] %vm58, %v420
    %423 = vst.msk [vmem:[#allocation2] sm:$0xff] %vm256, %v220
    %424 = vst.msk [vmem:[#allocation2 + $0x8] sm:$0xff] %vm256, %v221
    // Predicated region
    $region22: #{tpu_custom_call.1} parent=1 // pred_check
      %p425 = pneg %p40
    $region23: #{tpu_custom_call.1} parent=1 // pred_check_branch
      %427 = sbr.rel (%p425) target = $region25
    $region24: #{tpu_custom_call.1} parent=1 // pred_region
      %v428 = vld [vmem:[#allocation4] sm:$0xff]
      %v429 = vld [vmem:[#allocation4 + $0x8] sm:$0xff]
      %v430 = vld [vmem:[#allocation3] sm:$0xff]
      %v431 = vld [vmem:[#allocation3 + $0x8] sm:$0xff]
      %433 = vset.pattern.permute.xlu0 0
      %434 = vperm.xlu0 %433, %v430
      %v435 = vpop.permute.xlu0 %434
      %438 = vset.pattern.permute.xlu0 0
      %439 = vperm.xlu0 %438, %v431
      %v440 = vpop.permute.xlu0 %439
      %v442 = vrcp.pop %v435
      %v443 = vmul.f32 %v428, %v442
      %v444 = vrcp.pop %v440
      %v445 = vmul.f32 %v429, %v444
      %446 = vst.msk [vmem:[#allocation10] sm:$0xff] %vm58, %v443
      %447 = vst.msk [vmem:[#allocation10 + $0x8] sm:$0xff] %vm58, %v445
    $region25: #{tpu_custom_call.1} parent=1 // pred_fallthru
      _
    // Predicated region
    $region26: #{tpu_custom_call.1} parent=1 // pred_check
      _
    $region27: #{tpu_custom_call.1} parent=1 // pred_check_branch
      %449 = sbr.rel (0) target = $region29
    $region28: #{tpu_custom_call.1} parent=1 // pred_region
      %s451 = ssub.s32 256, 256
      %452 = vsyncadd [#allocation7], %s451
      %s453 = sshll.u32 [#allocation10], 4
      %s454 = int_to_ptr.vmem [resolvable:$true] %s453
      %459 = dma.vmem_to_hbm [thread:$0]  %s454, 256, %s2, [#allocation7], 128, 128, 8
    $region29: #{tpu_custom_call.1} parent=1 // pred_fallthru
      _
    // Predicated region
    $region30: #{tpu_custom_call.1} parent=1 // pred_check
      _
    $region31: #{tpu_custom_call.1} parent=1 // pred_check_branch
      %461 = sbr.rel (0) target = $region33
    $region32: #{tpu_custom_call.1} parent=1 // pred_region
      %462 = dma.done [#allocation7], 256
    $region33: #{tpu_custom_call.1} parent=1 // pred_fallthru
      _
    %463 = vsyncpa [#allocation6], 1
    %464 = vsyncpa [#allocation9], 1
    %465 = vsyncpa [#allocation7], 1

</llo_original>
